<compile_context>
chip_gen: v5e
topology: v5e:2x2
jax: 0.10.0
libtpu: 0.0.40
codegen_flags: <defaults>
</compile_context>

<pallas_src>
import math

import jax
import jax.numpy as jnp
from jax.experimental import pallas as pl
from jax.experimental.pallas import tpu as pltpu


TIME_STEPS = 128
EMBED_DIM = 32


def make_sinusoidal_table(time_steps: int, embed_dim: int) -> jnp.ndarray:
    """Deterministic parameter init, mirroring the PyTorch __init__ exactly."""
    position = jnp.arange(time_steps, dtype=jnp.float32)[:, None]          # (T, 1)
    div = jnp.exp(
        jnp.arange(0, embed_dim, 2, dtype=jnp.float32)
        * -(math.log(10000.0) / embed_dim)
    )                                                                      # (D/2,)
    table = jnp.zeros((time_steps, embed_dim), dtype=jnp.float32)
    table = table.at[:, 0::2].set(jnp.sin(position * div))
    table = table.at[:, 1::2].set(jnp.cos(position * div))
    return table


def _embed_kernel(t_ref, table_ref, out_ref):
    # t_ref:     (B,)   int32 in SMEM (scalar prefetch -- timestep indices)
    # table_ref: (T, D) f32 in VMEM  (whole sinusoidal table, ~16 KiB)
    # out_ref:   (B, D) f32 in VMEM
    #
    # Direct dynamic row copies (no MXU, no one-hot):  out[i, :] = table[t[i], :].
    # B is small & static so the Python loop fully unrolls into B vld/vst pairs.
    T = table_ref.shape[0]
    B = out_ref.shape[0]
    for i in range(B):
        # In-kernel clamp: an out-of-range t can never address outside the
        # table.  (Note: differs from PyTorch, which would wrap negatives or
        # raise on >= T; clamping is intentional here.)
        idx = jnp.clip(t_ref[i], 0, T - 1)
        out_ref[pl.ds(i, 1), :] = table_ref[pl.ds(idx, 1), :]


def sinusoidal_embeddings(x, t, table):
    # x is NCHW (B, C, H, W) exactly like the PyTorch module; it is only used
    # for `.to(x.device)` there, so we drop it here.  Output is
    # (B, embed_dim, 1, 1) f32, matching `embeds[:, :, None, None]`.
    del x
    B = t.shape[0]
    T, D = table.shape

    t_i32 = t.astype(jnp.int32)  # (B,) scalar-prefetch operand (lives in SMEM)

    out_2d = pl.pallas_call(
        _embed_kernel,
        out_shape=jax.ShapeDtypeStruct((B, D), table.dtype),
        grid_spec=pltpu.PrefetchScalarGridSpec(
            num_scalar_prefetch=1,           # t -> SMEM before the grid runs
            grid=(1,),                       # whole problem fits in VMEM
            in_specs=[
                pl.BlockSpec((T, D), lambda i, t_sref: (0, 0)),  # full table
            ],
            out_specs=pl.BlockSpec((B, D), lambda i, t_sref: (0, 0)),
        ),
        compiler_params=pltpu.CompilerParams(
            dimension_semantics=("arbitrary",),
        ),
    )(t_i32, table)

    return out_2d[:, :, None, None]


if __name__ == "__main__":
    key = jax.random.PRNGKey(0)
    kx, kt = jax.random.split(key)

    B, C, H, W = 8, 4, 16, 16
    x = jax.random.normal(kx, (B, C, H, W), dtype=jnp.float32)
    t = jax.random.randint(kt, (B,), 0, TIME_STEPS, dtype=jnp.int32)

    table = make_sinusoidal_table(TIME_STEPS, EMBED_DIM)

    out = sinusoidal_embeddings(x, t, table)
    out = jax.block_until_ready(out)

    # Reference (plain JAX) check of the gather + reshape semantics.
    ref = table[t][:, :, None, None]
    assert out.shape == (B, EMBED_DIM, 1, 1), out.shape
    assert out.dtype == jnp.float32
    assert jnp.allclose(out, ref), "Pallas gather mismatch vs reference"

    print("KERNEL_OK")
</pallas_src>

<mosaic_0001>
module attributes {stable_mosaic.version = 11 : i64} {
  func.func @_embed_kernel(%arg0: i32, %arg1: memref<8xi32, #tpu.memory_space<smem>>, %arg2: memref<128x32xf32, #tpu.memory_space<vmem>>, %arg3: memref<8x32xf32, #tpu.memory_space<vmem>>) attributes {dimension_semantics = [#tpu.dimension_semantics<arbitrary>], iteration_bounds = array<i64: 1>, scalar_prefetch = 1 : i64, scratch_operands = 0 : i64, tpu.core_type = #tpu.core_type<tc>, window_params = [{pipeline_mode = #tpu.pipeline_mode<synchronous>, transform_indices = @transform_0, window_bounds = array<i64: 128, 32>}, {pipeline_mode = #tpu.pipeline_mode<synchronous>, transform_indices = @transform_1, window_bounds = array<i64: 8, 32>}]} {
    %c0 = arith.constant 0 : index
    %0 = memref.load %arg1[%c0] : memref<8xi32, #tpu.memory_space<smem>>
    %c0_i32 = arith.constant 0 : i32
    %c127_i32 = arith.constant 127 : i32
    %1 = arith.maxsi %c0_i32, %0 : i32
    %2 = arith.minsi %c127_i32, %1 : i32
    %3 = arith.index_cast %2 : i32 to index
    %c0_0 = arith.constant 0 : index
    %4 = vector.load %arg2[%3, %c0_0] : memref<128x32xf32, #tpu.memory_space<vmem>>, vector<1x32xf32>
    %c0_1 = arith.constant 0 : index
    %c0_2 = arith.constant 0 : index
    %5 = vector.load %arg3[%c0_1, %c0_2] : memref<8x32xf32, #tpu.memory_space<vmem>>, vector<1x32xf32>
    tpu.vector_store %arg3[%c0_1, %c0_2], %4 {strides = array<i32>} : memref<8x32xf32, #tpu.memory_space<vmem>>, vector<1x32xf32>,
    %c1 = arith.constant 1 : index
    %6 = memref.load %arg1[%c1] : memref<8xi32, #tpu.memory_space<smem>>
    %c0_i32_3 = arith.constant 0 : i32
    %c127_i32_4 = arith.constant 127 : i32
    %7 = arith.maxsi %c0_i32_3, %6 : i32
    %8 = arith.minsi %c127_i32_4, %7 : i32
    %9 = arith.index_cast %8 : i32 to index
    %c0_5 = arith.constant 0 : index
    %10 = vector.load %arg2[%9, %c0_5] : memref<128x32xf32, #tpu.memory_space<vmem>>, vector<1x32xf32>
    %c1_6 = arith.constant 1 : index
    %c0_7 = arith.constant 0 : index
    %11 = vector.load %arg3[%c1_6, %c0_7] : memref<8x32xf32, #tpu.memory_space<vmem>>, vector<1x32xf32>
    tpu.vector_store %arg3[%c1_6, %c0_7], %10 {strides = array<i32>} : memref<8x32xf32, #tpu.memory_space<vmem>>, vector<1x32xf32>,
    %c2 = arith.constant 2 : index
    %12 = memref.load %arg1[%c2] : memref<8xi32, #tpu.memory_space<smem>>
    %c0_i32_8 = arith.constant 0 : i32
    %c127_i32_9 = arith.constant 127 : i32
    %13 = arith.maxsi %c0_i32_8, %12 : i32
    %14 = arith.minsi %c127_i32_9, %13 : i32
    %15 = arith.index_cast %14 : i32 to index
    %c0_10 = arith.constant 0 : index
    %16 = vector.load %arg2[%15, %c0_10] : memref<128x32xf32, #tpu.memory_space<vmem>>, vector<1x32xf32>
    %c2_11 = arith.constant 2 : index
    %c0_12 = arith.constant 0 : index
    %17 = vector.load %arg3[%c2_11, %c0_12] : memref<8x32xf32, #tpu.memory_space<vmem>>, vector<1x32xf32>
    tpu.vector_store %arg3[%c2_11, %c0_12], %16 {strides = array<i32>} : memref<8x32xf32, #tpu.memory_space<vmem>>, vector<1x32xf32>,
    %c3 = arith.constant 3 : index
    %18 = memref.load %arg1[%c3] : memref<8xi32, #tpu.memory_space<smem>>
    %c0_i32_13 = arith.constant 0 : i32
    %c127_i32_14 = arith.constant 127 : i32
    %19 = arith.maxsi %c0_i32_13, %18 : i32
    %20 = arith.minsi %c127_i32_14, %19 : i32
    %21 = arith.index_cast %20 : i32 to index
    %c0_15 = arith.constant 0 : index
    %22 = vector.load %arg2[%21, %c0_15] : memref<128x32xf32, #tpu.memory_space<vmem>>, vector<1x32xf32>
    %c3_16 = arith.constant 3 : index
    %c0_17 = arith.constant 0 : index
    %23 = vector.load %arg3[%c3_16, %c0_17] : memref<8x32xf32, #tpu.memory_space<vmem>>, vector<1x32xf32>
    tpu.vector_store %arg3[%c3_16, %c0_17], %22 {strides = array<i32>} : memref<8x32xf32, #tpu.memory_space<vmem>>, vector<1x32xf32>,
    %c4 = arith.constant 4 : index
    %24 = memref.load %arg1[%c4] : memref<8xi32, #tpu.memory_space<smem>>
    %c0_i32_18 = arith.constant 0 : i32
    %c127_i32_19 = arith.constant 127 : i32
    %25 = arith.maxsi %c0_i32_18, %24 : i32
    %26 = arith.minsi %c127_i32_19, %25 : i32
    %27 = arith.index_cast %26 : i32 to index
    %c0_20 = arith.constant 0 : index
    %28 = vector.load %arg2[%27, %c0_20] : memref<128x32xf32, #tpu.memory_space<vmem>>, vector<1x32xf32>
    %c4_21 = arith.constant 4 : index
    %c0_22 = arith.constant 0 : index
    %29 = vector.load %arg3[%c4_21, %c0_22] : memref<8x32xf32, #tpu.memory_space<vmem>>, vector<1x32xf32>
    tpu.vector_store %arg3[%c4_21, %c0_22], %28 {strides = array<i32>} : memref<8x32xf32, #tpu.memory_space<vmem>>, vector<1x32xf32>,
    %c5 = arith.constant 5 : index
    %30 = memref.load %arg1[%c5] : memref<8xi32, #tpu.memory_space<smem>>
    %c0_i32_23 = arith.constant 0 : i32
    %c127_i32_24 = arith.constant 127 : i32
    %31 = arith.maxsi %c0_i32_23, %30 : i32
    %32 = arith.minsi %c127_i32_24, %31 : i32
    %33 = arith.index_cast %32 : i32 to index
    %c0_25 = arith.constant 0 : index
    %34 = vector.load %arg2[%33, %c0_25] : memref<128x32xf32, #tpu.memory_space<vmem>>, vector<1x32xf32>
    %c5_26 = arith.constant 5 : index
    %c0_27 = arith.constant 0 : index
    %35 = vector.load %arg3[%c5_26, %c0_27] : memref<8x32xf32, #tpu.memory_space<vmem>>, vector<1x32xf32>
    tpu.vector_store %arg3[%c5_26, %c0_27], %34 {strides = array<i32>} : memref<8x32xf32, #tpu.memory_space<vmem>>, vector<1x32xf32>,
    %c6 = arith.constant 6 : index
    %36 = memref.load %arg1[%c6] : memref<8xi32, #tpu.memory_space<smem>>
    %c0_i32_28 = arith.constant 0 : i32
    %c127_i32_29 = arith.constant 127 : i32
    %37 = arith.maxsi %c0_i32_28, %36 : i32
    %38 = arith.minsi %c127_i32_29, %37 : i32
    %39 = arith.index_cast %38 : i32 to index
    %c0_30 = arith.constant 0 : index
    %40 = vector.load %arg2[%39, %c0_30] : memref<128x32xf32, #tpu.memory_space<vmem>>, vector<1x32xf32>
    %c6_31 = arith.constant 6 : index
    %c0_32 = arith.constant 0 : index
    %41 = vector.load %arg3[%c6_31, %c0_32] : memref<8x32xf32, #tpu.memory_space<vmem>>, vector<1x32xf32>
    tpu.vector_store %arg3[%c6_31, %c0_32], %40 {strides = array<i32>} : memref<8x32xf32, #tpu.memory_space<vmem>>, vector<1x32xf32>,
    %c7 = arith.constant 7 : index
    %42 = memref.load %arg1[%c7] : memref<8xi32, #tpu.memory_space<smem>>
    %c0_i32_33 = arith.constant 0 : i32
    %c127_i32_34 = arith.constant 127 : i32
    %43 = arith.maxsi %c0_i32_33, %42 : i32
    %44 = arith.minsi %c127_i32_34, %43 : i32
    %45 = arith.index_cast %44 : i32 to index
    %c0_35 = arith.constant 0 : index
    %46 = vector.load %arg2[%45, %c0_35] : memref<128x32xf32, #tpu.memory_space<vmem>>, vector<1x32xf32>
    %c7_36 = arith.constant 7 : index
    %c0_37 = arith.constant 0 : index
    %47 = vector.load %arg3[%c7_36, %c0_37] : memref<8x32xf32, #tpu.memory_space<vmem>>, vector<1x32xf32>
    tpu.vector_store %arg3[%c7_36, %c0_37], %46 {strides = array<i32>} : memref<8x32xf32, #tpu.memory_space<vmem>>, vector<1x32xf32>,
    return
  }
  func.func @transform_0(%arg0: i32, %arg1: memref<8xi32, #tpu.memory_space<smem>>) -> (i32, i32) {
    %c0_i32 = arith.constant 0 : i32
    %c0_i32_0 = arith.constant 0 : i32
    %c0_i32_1 = arith.constant 0 : i32
    return %c0_i32, %c0_i32_0 : i32, i32
  }
  func.func @transform_1(%arg0: i32, %arg1: memref<8xi32, #tpu.memory_space<smem>>) -> (i32, i32) {
    %c0_i32 = arith.constant 0 : i32
    %c0_i32_0 = arith.constant 0 : i32
    %c0_i32_1 = arith.constant 0 : i32
    return %c0_i32, %c0_i32_0 : i32, i32
  }
}

</mosaic_0001>

<llo_original>
// kernel: tpu_custom_call.1
$region0: #{tpu_custom_call.1}
  #allocation0 [shape = 'u32[]', space=smem, size = 0x4, offset = 0x4, fixed_abs, tag = 'smem constant byte address 0x4 - core index']
  #allocation1 [shape = 'u32[72,128]{1,0:T(1,128)}', space=vmem, size = 0x9000, scoped, tag = 'internal scratch']
  #allocation2 [shape = 's32[1]{0}', space=sflag, size = 0x4, scoped, tag = 'scoped memory for tpu_custom_call.1']
  #allocation3 [shape = 'u8[512]{0}', space=smem, size = 0x200, scoped, tag = 'prefetched SMEM operand 0']
  %s0 = inlined_call_operand.vmem [shape: s32[8], index: 0, kind: input, shape index: {}]
  %s1 = inlined_call_operand.vmem [shape: f32[128,32], index: 1, kind: input, shape index: {}]
  %s2 = inlined_call_operand.hbm [shape: f32[8,32], index: 2, kind: output, shape index: {}]
  %s3 = sld [smem:[#allocation0]]
  $region14: #{tpu_custom_call.1} parent=0
    _
  %s5 = ssub.s32 1, %s3
  %s6 = scalar_select 0, %s5, %s3
  %s8 = sshll.u32 %s0, 4
  %s9 = int_to_ptr.vmem [resolvable:$true] %s8
  %11 = dma.vmem_to_smem %s9, 16, [#allocation3], [#allocation2]
  %13 = dma.done [#allocation2], 16
  %14 = sfence
  $region1: #{tpu_custom_call.1} parent=0
    #allocation4 [shape = 'u8[4096]{0}', space=vmem, size = 0x1000, scoped, tag = 'output window, operand 0, single buffered']
    #allocation5 [shape = 's32[1]{0}', space=sflag, size = 0x4, scoped, tag = 'scoped memory for tpu_custom_call.1']
    %15 = vsyncpa [#allocation5], 0
    // Predicated region
    $region2: #{tpu_custom_call.1} parent=1 // pred_check
      _
    $region3: #{tpu_custom_call.1} parent=1 // pred_check_branch
      %17 = sbr.rel (0) target = $region5
    $region4: #{tpu_custom_call.1} parent=1 // pred_region
      _
    $region5: #{tpu_custom_call.1} parent=1 // pred_fallthru
      _
    %s18 = sld [smem:[#allocation3]]
    %p19 = scmp.gt.s32.totalorder %s18, 0
    %s20 = scalar_select %p19, %s18, 0
    %p21 = scmp.lt.s32.totalorder %s20, 127
    %s22 = scalar_select %p21, %s20, 127
    %s23 = scalar_lea.vmem %s1, %s22
    %v24 = vld [vmem:[%s23] sm:$0x1]
    %vm25 = vcmask 253952
    %26 = vst.msk [vmem:[#allocation4] sm:$0x1] %vm25, %v24
    %s27 = sld [smem:[#allocation3 + $0x1]]
    %p28 = scmp.gt.s32.totalorder %s27, 0
    %s29 = scalar_select %p28, %s27, 0
    %p30 = scmp.lt.s32.totalorder %s29, 127
    %s31 = scalar_select %p30, %s29, 127
    %s32 = scalar_lea.vmem %s1, %s31
    %v33 = vld [vmem:[%s32] sm:$0x1]
    %34 = vst.msk [vmem:[#allocation4 + $0x1] sm:$0x1] %vm25, %v33
    %s35 = sld [smem:[#allocation3 + $0x2]]
    %p36 = scmp.gt.s32.totalorder %s35, 0
    %s37 = scalar_select %p36, %s35, 0
    %p38 = scmp.lt.s32.totalorder %s37, 127
    %s39 = scalar_select %p38, %s37, 127
    %s40 = scalar_lea.vmem %s1, %s39
    %v41 = vld [vmem:[%s40] sm:$0x1]
    %42 = vst.msk [vmem:[#allocation4 + $0x2] sm:$0x1] %vm25, %v41
    %s43 = sld [smem:[#allocation3 + $0x3]]
    %p44 = scmp.gt.s32.totalorder %s43, 0
    %s45 = scalar_select %p44, %s43, 0
    %p46 = scmp.lt.s32.totalorder %s45, 127
    %s47 = scalar_select %p46, %s45, 127
    %s48 = scalar_lea.vmem %s1, %s47
    %v49 = vld [vmem:[%s48] sm:$0x1]
    %50 = vst.msk [vmem:[#allocation4 + $0x3] sm:$0x1] %vm25, %v49
    %s51 = sld [smem:[#allocation3 + $0x4]]
    %p52 = scmp.gt.s32.totalorder %s51, 0
    %s53 = scalar_select %p52, %s51, 0
    %p54 = scmp.lt.s32.totalorder %s53, 127
    %s55 = scalar_select %p54, %s53, 127
    %s56 = scalar_lea.vmem %s1, %s55
    %v57 = vld [vmem:[%s56] sm:$0x1]
    %58 = vst.msk [vmem:[#allocation4 + $0x4] sm:$0x1] %vm25, %v57
    %s59 = sld [smem:[#allocation3 + $0x5]]
    %p60 = scmp.gt.s32.totalorder %s59, 0
    %s61 = scalar_select %p60, %s59, 0
    %p62 = scmp.lt.s32.totalorder %s61, 127
    %s63 = scalar_select %p62, %s61, 127
    %s64 = scalar_lea.vmem %s1, %s63
    %v65 = vld [vmem:[%s64] sm:$0x1]
    %66 = vst.msk [vmem:[#allocation4 + $0x5] sm:$0x1] %vm25, %v65
    %s67 = sld [smem:[#allocation3 + $0x6]]
    %p68 = scmp.gt.s32.totalorder %s67, 0
    %s69 = scalar_select %p68, %s67, 0
    %p70 = scmp.lt.s32.totalorder %s69, 127
    %s71 = scalar_select %p70, %s69, 127
    %s72 = scalar_lea.vmem %s1, %s71
    %v73 = vld [vmem:[%s72] sm:$0x1]
    %74 = vst.msk [vmem:[#allocation4 + $0x6] sm:$0x1] %vm25, %v73
    %s75 = sld [smem:[#allocation3 + $0x7]]
    %p76 = scmp.gt.s32.totalorder %s75, 0
    %s77 = scalar_select %p76, %s75, 0
    %p78 = scmp.lt.s32.totalorder %s77, 127
    %s79 = scalar_select %p78, %s77, 127
    %s80 = scalar_lea.vmem %s1, %s79
    %v81 = vld [vmem:[%s80] sm:$0x1]
    %82 = vst.msk [vmem:[#allocation4 + $0x7] sm:$0x1] %vm25, %v81
    // Predicated region
    $region6: #{tpu_custom_call.1} parent=1 // pred_check
      _
    $region7: #{tpu_custom_call.1} parent=1 // pred_check_branch
      %84 = sbr.rel (0) target = $region9
    $region8: #{tpu_custom_call.1} parent=1 // pred_region
      %86 = vsyncadd [#allocation5], 0
      %s88 = sshll.u32 [#allocation4], 4
      %s89 = int_to_ptr.vmem [resolvable:$true] %s88
      %s90 = sshll.u32 %s2, 4
      %s91 = int_to_ptr.hbm [resolvable:$true] %s90
      %93 = dma.vmem_to_hbm [thread:$0]  %s89, 128, %s91, [#allocation5]
    $region9: #{tpu_custom_call.1} parent=1 // pred_fallthru
      _
    // Predicated region
    $region10: #{tpu_custom_call.1} parent=1 // pred_check
      _
    $region11: #{tpu_custom_call.1} parent=1 // pred_check_branch
      %95 = sbr.rel (0) target = $region13
    $region12: #{tpu_custom_call.1} parent=1 // pred_region
      %97 = dma.done [#allocation5], 128
    $region13: #{tpu_custom_call.1} parent=1 // pred_fallthru
      _
    %98 = vsyncpa [#allocation5], 1

</llo_original>
